<compile_context>
chip_gen: v6e
topology: v6e:2x2x1
jax: 0.10.0
libtpu: 0.0.40
codegen_flags: <defaults>
</compile_context>

<pallas_src>
import functools

import jax
import jax.numpy as jnp
import numpy as np
from jax.experimental import pallas as pl
from jax.experimental.pallas import tpu as pltpu


# ----------------------------- fused kernel -----------------------------------
def _gln_kernel(side_ref, x_ref, normal_t_ref, offset_ref, w_ref, o_ref, *,
                epsilon, apply_sigmoid):
    """One batch tile. Samples on lanes, features on sublanes.

    side_ref:     (S, TB)           side info, one sample per lane
    x_ref:        (D+1, TB)         [bias; probs-or-side] column per sample
    normal_t_ref: (C, S)            gating hyperplanes (transposed), grid-resident
    offset_ref:   (C, 1)            gating offsets, grid-resident
    w_ref:        (O, 2**C*(D+1))   context-major stacked weights: w[o, k*(D+1)+d] = W[k, d, o]
    o_ref:        (O, TB)           lane-dense output tile
    """
    C = offset_ref.shape[0]
    dp1 = x_ref.shape[0]
    n_ctx = w_ref.shape[1] // dp1

    # ---- gating: bits = (normal^T @ side > offset); gating = bin2dec(bits) ----
    ctx = jnp.dot(normal_t_ref[...], side_ref[...],
                  preferred_element_type=jnp.float32)                 # (C, TB)  MXU
    bits = (ctx > offset_ref[...]).astype(jnp.float32)                # (C, TB)  VPU
    g = bits[0:1, :] * jnp.float32(2 ** (C - 1))                      # static C-term unroll
    for c in range(1, C):                                             # (C terms, not 2**C)
        g = g + bits[c:c + 1, :] * jnp.float32(2 ** (C - 1 - c))
    gating = g.astype(jnp.int32)                                      # (1, TB) exact small ints

    # ---- logit(x); logit(sigmoid(clip(z))) == clip(z) in the side-info branch ----
    xx = x_ref[...]                                                   # (D+1, TB)
    if apply_sigmoid:
        b_row = xx[0:1, :]                                            # bias row needs a real logit
        logit_x = jnp.concatenate(
            [jnp.log(b_row) - jnp.log1p(-b_row),
             jnp.clip(xx[1:, :], epsilon, 1.0 - epsilon)], axis=0)    # (D+1, TB)
    else:
        logit_x = jnp.log(xx) - jnp.log1p(-xx)                        # torch.logit on all rows
        # TODO(synk): like the PyTorch module, no clamp here — input_data outside (0,1) yields inf/nan.

    # ---- context select fused into ONE matmul against the stacked weight table ----
    # kcol[k*(D+1)+d] = k : context id of each stacked-weight row (splat + concat, no dense const)
    kcol = jnp.concatenate(
        [jnp.full((dp1, 1), k, jnp.int32) for k in range(n_ctx)], axis=0)   # (2**C*(D+1), 1)
    lx_stacked = jnp.concatenate([logit_x] * n_ctx, axis=0)                  # (2**C*(D+1), TB)
    xg = jnp.where(kcol == gating, lx_stacked, 0.0)                   # single vectorized select
    y = jnp.dot(w_ref[...], xg, preferred_element_type=jnp.float32)   # (O, TB)  MXU
    o_ref[...] = jnp.clip(jax.nn.sigmoid(y), epsilon, 1.0 - epsilon)  # lane-dense store


# ----------------------------- wrapper factory ---------------------------------
def make_gated_linear_forward(params, *, lane_tile=128):
    """Build jitted forward fns with constant preprocessing hoisted to device.

    Returns (forward, forward_batched):
      forward(side_info[, input_data])          : (S,) [,(D,)]   -> (O,)   — matches the module
      forward_batched(side_info[, input_data])  : (B,S) [,(B,D)] -> (B,O)
    """
    assert lane_tile % 128 == 0
    epsilon = float(params["epsilon"])
    weights = jnp.asarray(params["weights"], jnp.float32)             # (2**C, D+1, O)
    n_ctx, dp1, odim = weights.shape
    normal = jnp.asarray(params["normal"], jnp.float32)               # (S, C)
    S, C = normal.shape
    assert n_ctx == 2 ** C

    # Hoisted device-resident derived constants (no per-call host preprocessing).
    normal_t = normal.T                                               # (C, S)
    offset_col = jnp.asarray(params["offset"], jnp.float32)[:, None]  # (C, 1)
    # context-major stacked weights: w_t[o, k*(D+1)+d] = W[k, d, o]
    w_t = jnp.transpose(weights, (2, 0, 1)).reshape(odim, n_ctx * dp1)
    bias = jnp.asarray(params["bias"], jnp.float32).reshape(1, 1)     # (1, 1)

    def _call_kernel(side_bT, x_bT, apply_sigmoid, b_pad):
        return pl.pallas_call(
            functools.partial(_gln_kernel, epsilon=epsilon,
                              apply_sigmoid=apply_sigmoid),
            out_shape=jax.ShapeDtypeStruct((odim, b_pad), jnp.float32),
            grid=(b_pad // lane_tile,),
            in_specs=[
                pl.BlockSpec((S, lane_tile), lambda i: (0, i)),        # side (tiled over batch)
                pl.BlockSpec((dp1, lane_tile), lambda i: (0, i)),      # [bias; probs]
                pl.BlockSpec((C, S), lambda i: (0, 0)),                # normal^T  (resident)
                pl.BlockSpec((C, 1), lambda i: (0, 0)),                # offset    (resident)
                pl.BlockSpec((odim, n_ctx * dp1), lambda i: (0, 0)),   # weights   (resident)
            ],
            out_specs=pl.BlockSpec((odim, lane_tile), lambda i: (0, i)),
            compiler_params=pltpu.CompilerParams(
                # batch axis is embarrassingly parallel -> both v7x TensorCores used
                dimension_semantics=("parallel",)),
        )(side_bT, x_bT, normal_t, offset_col, w_t)

    @jax.jit
    def forward_batched(side_info, input_data=None):
        B = side_info.shape[0]
        b_pad = -(-B // lane_tile) * lane_tile                         # pad batch to lane tile
        side_bT = jnp.pad(side_info.astype(jnp.float32).T,
                          ((0, 0), (0, b_pad - B)))                    # (S, b_pad)
        if input_data is None:
            rows = side_bT                                             # module builds x from side
            apply_sigmoid = True
        else:
            rows = jnp.pad(input_data.astype(jnp.float32).T,
                           ((0, 0), (0, b_pad - B)), constant_values=0.5)
            apply_sigmoid = False
        x_bT = jnp.concatenate([jnp.broadcast_to(bias, (1, b_pad)), rows], axis=0)  # (D+1, b_pad)
        out_t = _call_kernel(side_bT, x_bT, apply_sigmoid, b_pad)      # (O, b_pad) lane-dense
        return out_t[:, :B].T                                          # (B, O)

    def forward(side_info, input_data=None):
        out = forward_batched(side_info[None, :],
                              None if input_data is None else input_data[None, :])
        return out[0]

    return forward, forward_batched


# ----------------------------- params / reference ------------------------------
def init_params(key, input_dimension, output_dimension, context_dimension,
                side_dimension, epsilon=0.01):
    k_off, k_norm, k_bias = jax.random.split(key, 3)
    offset = jax.random.normal(k_off, (context_dimension,), dtype=jnp.float32)
    normal = jax.random.normal(k_norm, (side_dimension, context_dimension),
                               dtype=jnp.float32)
    normal = normal / jnp.maximum(
        jnp.linalg.norm(normal, axis=1, keepdims=True), 1e-12)  # F.normalize(dim=1)
    weights = (1.0 / (input_dimension + 1)) * jnp.ones(
        (2 ** context_dimension, input_dimension + 1, output_dimension),
        dtype=jnp.float32)
    bias = epsilon + jax.random.uniform(k_bias, (1,), dtype=jnp.float32) * (1.0 - 2.0 * epsilon)
    bias = jnp.where(bias == 0.5, bias + 1e-3, bias)  # init-time resample guard (host side)
    return dict(offset=offset, normal=normal, weights=weights, bias=bias,
                epsilon=epsilon)


def reference_forward(params, side_info, input_data=None):
    """Pure-JAX reference mirroring the PyTorch forward."""
    eps = float(params["epsilon"])
    side = side_info.astype(jnp.float32)
    if input_data is None:
        x = jnp.concatenate(
            [params["bias"], jax.nn.sigmoid(jnp.clip(side, eps, 1.0 - eps))])
    else:
        x = jnp.concatenate([params["bias"], input_data.astype(jnp.float32)])
    c = params["offset"].shape[0]
    bits = (side @ params["normal"] > params["offset"]).astype(jnp.float32)
    powers = 2.0 ** jnp.arange(c - 1, -1, -1, dtype=jnp.float32)
    gating = (bits @ powers).astype(jnp.int32)
    logit_x = jnp.log(x) - jnp.log1p(-x)
    out = jax.nn.sigmoid(logit_x @ params["weights"][gating])
    return jnp.clip(out, eps, 1.0 - eps)


# ----------------------------- main -------------------------------------------
if __name__ == "__main__":
    key = jax.random.PRNGKey(0)
    k_params, k_side, k_in, k_w2, k_sideb, k_inb = jax.random.split(key, 6)

    # input_dimension=8, output_dimension=4, context_dimension=3, side_dimension=8
    D, O, C, S = 8, 4, 3, 8
    params = init_params(k_params, D, O, C, S)

    # Second param set with non-uniform weights so the per-sample gated select matters.
    params2 = dict(params)
    params2["weights"] = jax.random.uniform(
        k_w2, params["weights"].shape, dtype=jnp.float32, minval=-0.5, maxval=0.5)

    fwd, fwd_b = make_gated_linear_forward(params)
    fwd2, fwd2_b = make_gated_linear_forward(params2)

    side_info = jax.random.normal(k_side, (S,), dtype=jnp.float32)
    input_data = jax.random.uniform(k_in, (D,), dtype=jnp.float32,
                                    minval=0.05, maxval=0.95)

    # Branch 1: input_data=None (module builds x from side_info) — faithful init.
    out1 = jax.block_until_ready(fwd(side_info))
    np.testing.assert_allclose(
        np.asarray(out1), np.asarray(reference_forward(params, side_info)),
        rtol=1e-5, atol=1e-5)

    # Branch 2: explicit input_data + non-uniform weights.
    out2 = jax.block_until_ready(fwd2(side_info, input_data))
    np.testing.assert_allclose(
        np.asarray(out2),
        np.asarray(reference_forward(params2, side_info, input_data)),
        rtol=1e-5, atol=1e-5)

    # Batched path: B samples in ONE pallas_call (lane-dense output, parallel grid).
    B = 5
    side_b = jax.random.normal(k_sideb, (B, S), dtype=jnp.float32)
    input_b = jax.random.uniform(k_inb, (B, D), dtype=jnp.float32,
                                 minval=0.05, maxval=0.95)

    out_b = jax.block_until_ready(fwd2_b(side_b, input_b))
    ref_b = jax.vmap(lambda s, x: reference_forward(params2, s, x))(side_b, input_b)
    np.testing.assert_allclose(np.asarray(out_b), np.asarray(ref_b),
                               rtol=1e-5, atol=1e-5)

    out_b1 = jax.block_until_ready(fwd2_b(side_b))
    ref_b1 = jax.vmap(lambda s: reference_forward(params2, s))(side_b)
    np.testing.assert_allclose(np.asarray(out_b1), np.asarray(ref_b1),
                               rtol=1e-5, atol=1e-5)

    print("KERNEL_OK")
</pallas_src>

<mosaic_0001>
module attributes {stable_mosaic.version = 11 : i64} {
  func.func @_gln_kernel(%arg0: i32, %arg1: memref<8x128xf32, #tpu.memory_space<vmem>>, %arg2: memref<9x128xf32, #tpu.memory_space<vmem>>, %arg3: memref<3x8xf32, #tpu.memory_space<vmem>>, %arg4: memref<3x1xf32, #tpu.memory_space<vmem>>, %arg5: memref<4x72xf32, #tpu.memory_space<vmem>>, %arg6: memref<4x128xf32, #tpu.memory_space<vmem>>) attributes {dimension_semantics = [#tpu.dimension_semantics<parallel>], iteration_bounds = array<i64: 1>, scalar_prefetch = 0 : i64, scratch_operands = 0 : i64, tpu.core_type = #tpu.core_type<tc>, window_params = [{transform_indices = @transform_0, window_bounds = array<i64: 8, 128>}, {transform_indices = @transform_1, window_bounds = array<i64: 9, 128>}, {pipeline_mode = #tpu.pipeline_mode<synchronous>, transform_indices = @transform_2, window_bounds = array<i64: 3, 8>}, {pipeline_mode = #tpu.pipeline_mode<synchronous>, transform_indices = @transform_3, window_bounds = array<i64: 3, 1>}, {pipeline_mode = #tpu.pipeline_mode<synchronous>, transform_indices = @transform_4, window_bounds = array<i64: 4, 72>}, {transform_indices = @transform_5, window_bounds = array<i64: 4, 128>}]} {
    %c0 = arith.constant 0 : index
    %c0_0 = arith.constant 0 : index
    %0 = vector.load %arg3[%c0, %c0_0] : memref<3x8xf32, #tpu.memory_space<vmem>>, vector<3x8xf32>
    %c0_1 = arith.constant 0 : index
    %c0_2 = arith.constant 0 : index
    %1 = vector.load %arg1[%c0_1, %c0_2] : memref<8x128xf32, #tpu.memory_space<vmem>>, vector<8x128xf32>
    %cst = arith.constant dense<0.000000e+00> : vector<3x128xf32>
    %2 = tpu.matmul %0, %1, %cst {dimension_numbers = #tpu.dot_dimension_numbers<[1], [0], [0], [1], [0, 0, 1, 1], [], []>} : vector<3x8xf32>, vector<8x128xf32>, vector<3x128xf32> -> vector<3x128xf32>
    %c0_3 = arith.constant 0 : index
    %c0_4 = arith.constant 0 : index
    %3 = vector.load %arg4[%c0_3, %c0_4] : memref<3x1xf32, #tpu.memory_space<vmem>>, vector<3x1xf32>
    %4 = vector.broadcast %3 : vector<3x1xf32> to vector<3x128xf32>
    %5 = arith.cmpf ogt, %2, %4 : vector<3x128xf32>
    %6 = arith.extui %5 : vector<3x128xi1> to vector<3x128xi32>
    %7 = arith.sitofp %6 : vector<3x128xi32> to vector<3x128xf32>
    %8 = vector.extract_strided_slice %7 {offsets = [0, 0], sizes = [1, 128], strides = [1, 1]} : vector<3x128xf32> to vector<1x128xf32>
    %cst_5 = arith.constant 4.000000e+00 : f32
    %9 = vector.broadcast %cst_5 : f32 to vector<1x128xf32>
    %10 = arith.mulf %8, %9 : vector<1x128xf32>
    %11 = vector.extract_strided_slice %7 {offsets = [1, 0], sizes = [1, 128], strides = [1, 1]} : vector<3x128xf32> to vector<1x128xf32>
    %cst_6 = arith.constant 2.000000e+00 : f32
    %12 = vector.broadcast %cst_6 : f32 to vector<1x128xf32>
    %13 = arith.mulf %11, %12 : vector<1x128xf32>
    %14 = arith.addf %10, %13 : vector<1x128xf32>
    %15 = vector.extract_strided_slice %7 {offsets = [2, 0], sizes = [1, 128], strides = [1, 1]} : vector<3x128xf32> to vector<1x128xf32>
    %cst_7 = arith.constant 1.000000e+00 : f32
    %16 = vector.broadcast %cst_7 : f32 to vector<1x128xf32>
    %17 = arith.mulf %15, %16 : vector<1x128xf32>
    %18 = arith.addf %14, %17 : vector<1x128xf32>
    %19 = arith.fptosi %18 : vector<1x128xf32> to vector<1x128xi32>
    %c0_8 = arith.constant 0 : index
    %c0_9 = arith.constant 0 : index
    %20 = vector.load %arg2[%c0_8, %c0_9] : memref<9x128xf32, #tpu.memory_space<vmem>>, vector<9x128xf32>
    %21 = vector.extract_strided_slice %20 {offsets = [0, 0], sizes = [1, 128], strides = [1, 1]} : vector<9x128xf32> to vector<1x128xf32>
    %22 = math.log %21 : vector<1x128xf32>
    %cst_10 = arith.constant 0.000000e+00 : f32
    %23 = vector.broadcast %cst_10 : f32 to vector<1x128xf32>
    %24 = arith.subf %23, %21 : vector<1x128xf32>
    %25 = math.log1p %24 : vector<1x128xf32>
    %26 = arith.subf %22, %25 : vector<1x128xf32>
    %27 = vector.extract_strided_slice %20 {offsets = [1, 0], sizes = [8, 128], strides = [1, 1]} : vector<9x128xf32> to vector<8x128xf32>
    %cst_11 = arith.constant 0.00999999977 : f32
    %cst_12 = arith.constant 9.900000e-01 : f32
    %28 = vector.broadcast %cst_11 : f32 to vector<8x128xf32>
    %29 = arith.maximumf %28, %27 : vector<8x128xf32>
    %30 = vector.broadcast %cst_12 : f32 to vector<8x128xf32>
    %31 = arith.minimumf %30, %29 : vector<8x128xf32>
    %32 = tpu.concatenate %26, %31 in 0 : vector<1x128xf32>, vector<8x128xf32> -> vector<9x128xf32>
    %c0_i32 = arith.constant 0 : i32
    %33 = vector.broadcast %c0_i32 : i32 to vector<9x1xi32>
    %c1_i32 = arith.constant 1 : i32
    %34 = vector.broadcast %c1_i32 : i32 to vector<9x1xi32>
    %c2_i32 = arith.constant 2 : i32
    %35 = vector.broadcast %c2_i32 : i32 to vector<9x1xi32>
    %c3_i32 = arith.constant 3 : i32
    %36 = vector.broadcast %c3_i32 : i32 to vector<9x1xi32>
    %c4_i32 = arith.constant 4 : i32
    %37 = vector.broadcast %c4_i32 : i32 to vector<9x1xi32>
    %c5_i32 = arith.constant 5 : i32
    %38 = vector.broadcast %c5_i32 : i32 to vector<9x1xi32>
    %c6_i32 = arith.constant 6 : i32
    %39 = vector.broadcast %c6_i32 : i32 to vector<9x1xi32>
    %c7_i32 = arith.constant 7 : i32
    %40 = vector.broadcast %c7_i32 : i32 to vector<9x1xi32>
    %41 = tpu.concatenate %33, %34, %35, %36, %37, %38, %39, %40 in 0 : vector<9x1xi32>, vector<9x1xi32>, vector<9x1xi32>, vector<9x1xi32>, vector<9x1xi32>, vector<9x1xi32>, vector<9x1xi32>, vector<9x1xi32> -> vector<72x1xi32>
    %42 = tpu.concatenate %32, %32, %32, %32, %32, %32, %32, %32 in 0 : vector<9x128xf32>, vector<9x128xf32>, vector<9x128xf32>, vector<9x128xf32>, vector<9x128xf32>, vector<9x128xf32>, vector<9x128xf32>, vector<9x128xf32> -> vector<72x128xf32>
    %43 = vector.broadcast %41 : vector<72x1xi32> to vector<72x128xi32>
    %44 = vector.broadcast %19 : vector<1x128xi32> to vector<72x128xi32>
    %45 = arith.cmpi eq, %43, %44 : vector<72x128xi32>
    %cst_13 = arith.constant 0.000000e+00 : f32
    %46 = vector.broadcast %cst_13 : f32 to vector<72x128xf32>
    %47 = arith.select %45, %42, %46 : vector<72x128xi1>, vector<72x128xf32>
    %c0_14 = arith.constant 0 : index
    %c0_15 = arith.constant 0 : index
    %48 = vector.load %arg5[%c0_14, %c0_15] : memref<4x72xf32, #tpu.memory_space<vmem>>, vector<4x72xf32>
    %cst_16 = arith.constant dense<0.000000e+00> : vector<4x128xf32>
    %49 = tpu.matmul %48, %47, %cst_16 {dimension_numbers = #tpu.dot_dimension_numbers<[1], [0], [0], [1], [0, 0, 1, 1], [], []>} : vector<4x72xf32>, vector<72x128xf32>, vector<4x128xf32> -> vector<4x128xf32>
    %50 = arith.negf %49 : vector<4x128xf32>
    %51 = math.exp %50 : vector<4x128xf32>
    %cst_17 = arith.constant 1.000000e+00 : f32
    %52 = vector.broadcast %cst_17 : f32 to vector<4x128xf32>
    %53 = arith.addf %52, %51 : vector<4x128xf32>
    %54 = arith.divf %52, %53 : vector<4x128xf32>
    %cst_18 = arith.constant 0.00999999977 : f32
    %cst_19 = arith.constant 9.900000e-01 : f32
    %55 = vector.broadcast %cst_18 : f32 to vector<4x128xf32>
    %56 = arith.maximumf %55, %54 : vector<4x128xf32>
    %57 = vector.broadcast %cst_19 : f32 to vector<4x128xf32>
    %58 = arith.minimumf %57, %56 : vector<4x128xf32>
    %c0_20 = arith.constant 0 : index
    %c0_21 = arith.constant 0 : index
    %59 = vector.load %arg6[%c0_20, %c0_21] : memref<4x128xf32, #tpu.memory_space<vmem>>, vector<4x128xf32>
    tpu.vector_store %arg6[%c0_20, %c0_21], %58 {strides = array<i32>} : memref<4x128xf32, #tpu.memory_space<vmem>>, vector<4x128xf32>,
    return
  }
  func.func @transform_0(%arg0: i32) -> (i32, i32) {
    %c0_i32 = arith.constant 0 : i32
    %c0_i32_0 = arith.constant 0 : i32
    return %c0_i32, %arg0 : i32, i32
  }
  func.func @transform_1(%arg0: i32) -> (i32, i32) {
    %c0_i32 = arith.constant 0 : i32
    %c0_i32_0 = arith.constant 0 : i32
    return %c0_i32, %arg0 : i32, i32
  }
  func.func @transform_2(%arg0: i32) -> (i32, i32) {
    %c0_i32 = arith.constant 0 : i32
    %c0_i32_0 = arith.constant 0 : i32
    %c0_i32_1 = arith.constant 0 : i32
    return %c0_i32, %c0_i32_0 : i32, i32
  }
  func.func @transform_3(%arg0: i32) -> (i32, i32) {
    %c0_i32 = arith.constant 0 : i32
    %c0_i32_0 = arith.constant 0 : i32
    %c0_i32_1 = arith.constant 0 : i32
    return %c0_i32, %c0_i32_0 : i32, i32
  }
  func.func @transform_4(%arg0: i32) -> (i32, i32) {
    %c0_i32 = arith.constant 0 : i32
    %c0_i32_0 = arith.constant 0 : i32
    %c0_i32_1 = arith.constant 0 : i32
    return %c0_i32, %c0_i32_0 : i32, i32
  }
  func.func @transform_5(%arg0: i32) -> (i32, i32) {
    %c0_i32 = arith.constant 0 : i32
    %c0_i32_0 = arith.constant 0 : i32
    return %c0_i32, %arg0 : i32, i32
  }
}

</mosaic_0001>

<llo_original>
// kernel: forward_batched.1
$region0: #{forward_batched.1}
  #allocation0 [shape = 'u32[]', space=smem, size = 0x4, offset = 0x4, fixed_abs, tag = 'smem constant byte address 0x4 - core index']
  #allocation1 [shape = 'u32[144,128]{1,0:T(1,128)}', space=vmem, size = 0x12000, scoped, tag = 'internal scratch']
  %s0 = inlined_call_operand.vmem [shape: f32[8,128], index: 0, kind: input, shape index: {}]
  %s1 = inlined_call_operand.vmem [shape: f32[9,128], index: 1, kind: input, shape index: {}]
  %s2 = inlined_call_operand.vmem [shape: f32[3,8], index: 2, kind: input, shape index: {}]
  %s3 = inlined_call_operand.vmem [shape: f32[3,1], index: 3, kind: input, shape index: {}]
  %s4 = inlined_call_operand.vmem [shape: f32[4,72], index: 4, kind: input, shape index: {}]
  %s5 = inlined_call_operand.vmem [shape: f32[4,128], index: 5, kind: output, shape index: {}]
  %s6 = sld [smem:[#allocation0]]
  $region30: #{forward_batched.1} parent=0
    _
  %s8 = ssub.s32 1, %s6
  %s9 = scalar_select 0, %s8, %s6
  // Predicated region
  $region2: #{forward_batched.1} parent=0 // pred_check
    _
  $region3: #{forward_batched.1} parent=0 // pred_check_branch
    %11 = sbr.rel (0) target = $region5
  $region4: #{forward_batched.1} parent=0 // pred_region
    _
  $region5: #{forward_batched.1} parent=0 // pred_fallthru
    _
  // Predicated region
  $region6: #{forward_batched.1} parent=0 // pred_check
    _
  $region7: #{forward_batched.1} parent=0 // pred_check_branch
    %13 = sbr.rel (0) target = $region9
  $region8: #{forward_batched.1} parent=0 // pred_region
    _
  $region9: #{forward_batched.1} parent=0 // pred_fallthru
    _
  // Predicated region
  $region10: #{forward_batched.1} parent=0 // pred_check
    _
  $region11: #{forward_batched.1} parent=0 // pred_check_branch
    %15 = sbr.rel (0) target = $region13
  $region12: #{forward_batched.1} parent=0 // pred_region
    _
  $region13: #{forward_batched.1} parent=0 // pred_fallthru
    _
  // Predicated region
  $region14: #{forward_batched.1} parent=0 // pred_check
    _
  $region15: #{forward_batched.1} parent=0 // pred_check_branch
    %17 = sbr.rel (0) target = $region17
  $region16: #{forward_batched.1} parent=0 // pred_region
    _
  $region17: #{forward_batched.1} parent=0 // pred_fallthru
    _
  // Predicated region
  $region18: #{forward_batched.1} parent=0 // pred_check
    _
  $region19: #{forward_batched.1} parent=0 // pred_check_branch
    %19 = sbr.rel (0) target = $region21
  $region20: #{forward_batched.1} parent=0 // pred_region
    _
  $region21: #{forward_batched.1} parent=0 // pred_fallthru
    _
  %v20 = vld [vmem:[%s2] sm:$0x7]
  %v21 = vld [vmem:[%s0] sm:$0xff]
  %vm22 = vcmask 64512
  %v24 = vsel %vm22, %v20, 0
  %26 = vmatprep.subr.mxu0 0.0
  %27 = vmatpush1.msra.mxu0 0.0
  %28 = vmatprep.subr.mxu0 0.0
  %29 = vmatpush1.msra.mxu0 0.0
  %30 = vmatprep.subr.mxu0 0.0
  %31 = vmatpush1.msra.mxu0 0.0
  %32 = vmatprep.subr.mxu0 0.0
  %33 = vmatpush1.msra.mxu0 0.0
  %34 = vmatprep.subr.mxu0 0.0
  %35 = vmatpush1.msra.mxu0 0.0
  %36 = vmatprep.subr.mxu0 0.0
  %37 = vmatpush1.msra.mxu0 0.0
  %38 = vmatprep.subr.mxu0 0.0
  %39 = vmatpush1.msra.mxu0 0.0
  %40 = vmatprep.subr.mxu0 0.0
  %41 = vmatpush1.msra.mxu0 0.0
  %42 = vmatprep.subr.mxu0 0.0
  %43 = vmatpush1.msra.mxu0 0.0
  %44 = vmatprep.subr.mxu0 0.0
  %45 = vmatpush1.msra.mxu0 0.0
  %46 = vmatprep.subr.mxu0 0.0
  %47 = vmatpush1.msra.mxu0 0.0
  %48 = vmatprep.subr.mxu0 0.0
  %49 = vmatpush1.msra.mxu0 0.0
  %50 = vmatprep.subr.mxu0 0.0
  %51 = vmatpush1.msra.mxu0 0.0
  %52 = vmatprep.subr.mxu0 0.0
  %53 = vmatpush1.msra.mxu0 0.0
  %54 = vmatprep.subr.mxu0 0.0
  %55 = vmatpush1.msra.mxu0 0.0
  %56 = vmatprep.subr.mxu0 0.0
  %57 = vmatpush1.msra.mxu0 %v21
  %58 = vmatprep.subr.mxu0 0.0
  %59 = vmatpush2.msra.mxu0 0.0
  %60 = vmatprep.subr.mxu0 0.0
  %61 = vmatpush2.msra.mxu0 0.0
  %62 = vmatprep.subr.mxu0 0.0
  %63 = vmatpush2.msra.mxu0 0.0
  %64 = vmatprep.subr.mxu0 0.0
  %65 = vmatpush2.msra.mxu0 0.0
  %66 = vmatprep.subr.mxu0 0.0
  %67 = vmatpush2.msra.mxu0 0.0
  %68 = vmatprep.subr.mxu0 0.0
  %69 = vmatpush2.msra.mxu0 0.0
  %70 = vmatprep.subr.mxu0 0.0
  %71 = vmatpush2.msra.mxu0 0.0
  %72 = vmatprep.subr.mxu0 0.0
  %73 = vmatpush2.msra.mxu0 0.0
  %74 = vmatprep.subr.mxu0 0.0
  %75 = vmatpush2.msra.mxu0 0.0
  %76 = vmatprep.subr.mxu0 0.0
  %77 = vmatpush2.msra.mxu0 0.0
  %78 = vmatprep.subr.mxu0 0.0
  %79 = vmatpush2.msra.mxu0 0.0
  %80 = vmatprep.subr.mxu0 0.0
  %81 = vmatpush2.msra.mxu0 0.0
  %82 = vmatprep.subr.mxu0 0.0
  %83 = vmatpush2.msra.mxu0 0.0
  %84 = vmatprep.subr.mxu0 0.0
  %85 = vmatpush2.msra.mxu0 0.0
  %86 = vmatprep.subr.mxu0 0.0
  %87 = vmatpush2.msra.mxu0 0.0
  %88 = vmatprep.subr.mxu0 0.0
  %89 = vmatpush2.msra.mxu0 0.0
  %90 = vmatprep.mubr.f32.mxu0 0.0
  %91 = vmatmul.mubr.f32.gmra.mxu0 %v24
  %v92 = vpop.f32.mrf.mxu0
  %v93 = vadd.f32 0.0, %v92
  %v94 = vpop.f32.mrf.mxu0
  %95 = vdwg.mxu0
  %v96 = vld [vmem:[%s3] sm:$0x7]
  %98 = vset.pattern.permute.xlu0 0
  %99 = vperm.xlu0 %98, %v96
  %v100 = vpop.permute.xlu0 %99
  %vm102 = vcmp.gt.f32.partialorder %v93, %v100
  %v103 = vsel %vm102, 1, 0
  %v104 = vcvt.s32.f32 %v103
  %v105 = vmul.f32 %v104, 4.0
  %v106 = vmul.f32 %v104, 2.0
  %v108 = vrot.slane %v106, 1
  %v110 = vadd.f32 %v105, %v108
  %v112 = vrot.slane %v104, 2
  %v114 = vadd.f32 %v110, %v112
  %v115 = vcvt.f32.s32.to.zero.pseudo %v114
  %v116 = vld [vmem:[%s1] sm:$0xff]
  %v117 = vld [vmem:[%s1 + $0x8] sm:$0x1]
  %v118 = vlog2.pop %v116
  %v119 = vmul.f32 %v118, 0.6931472
  %v120 = vsub.f32 0.0, %v116
  %v121 = vadd.f32 %v120, 1.0
  %v122 = vlog2.pop %v121
  %v123 = vmul.f32 %v122, 0.6931472
  %v124 = vmul.f32 -0.5, %v120
  %v125 = vadd.f32 %v124, 1.0
  %v126 = vmul.f32 %v125, %v120
  %v127 = vand.u32 2147483647, %v120
  %vm128 = vcmp.lt.f32.partialorder %v127, 0.0004427343
  %v129 = vsel %vm128, %v126, %v123
  %v130 = vsub.f32 %v119, %v129
  %v131 = vmax.f32 %v116, 0.01
  %v132 = vmax.f32 %v117, 0.01
  %v133 = vmin.f32 %v131, 0.99
  %v134 = vmin.f32 %v132, 0.99
  %vm135 = vcmask 1040384
  %v136 = vsel %vm135, %v130, %v133
  %v137 = vsel %vm135, 0, 1
  %vm138 = vcmask 1041408
  %v139 = vsel %vm138, 1, 2
  %vm140 = vcmask 1042432
  %v141 = vsel %vm140, 2, 3
  %vm142 = vcmask 1043456
  %v143 = vsel %vm142, 3, 4
  %vm144 = vcmask 1044480
  %v145 = vsel %vm144, 4, 5
  %vm146 = vcmask 1045504
  %v147 = vsel %vm146, 5, 6
  %vm148 = vcmask 1046528
  %v149 = vsel %vm148, 6, 7
  %v152 = vrot.slane %v136, 7
  %v153 = vrot.slane %v134, 7
  %v154 = vsel %vm135, %v152, %v153
  %v157 = vrot.slane %v136, 6
  %v158 = vrot.slane %v134, 6
  %v159 = vsel %vm138, %v157, %v158
  %v162 = vrot.slane %v136, 5
  %v163 = vrot.slane %v134, 5
  %v164 = vsel %vm140, %v162, %v163
  %v167 = vrot.slane %v136, 4
  %v168 = vrot.slane %v134, 4
  %v169 = vsel %vm142, %v167, %v168
  %v172 = vrot.slane %v136, 3
  %v173 = vrot.slane %v134, 3
  %v174 = vsel %vm144, %v172, %v173
  %v177 = vrot.slane %v136, 2
  %v178 = vrot.slane %v134, 2
  %v179 = vsel %vm146, %v177, %v178
  %v182 = vrot.slane %v136, 1
  %v183 = vrot.slane %v134, 1
  %v184 = vsel %vm148, %v182, %v183
  %v187 = vsel %vm135, %v134, %v152
  %v188 = vsel %vm138, %v154, %v157
  %v189 = vsel %vm140, %v159, %v162
  %v190 = vsel %vm142, %v164, %v167
  %v191 = vsel %vm144, %v169, %v172
  %v192 = vsel %vm146, %v174, %v177
  %v193 = vsel %vm148, %v179, %v182
  %194 = vset.pattern.permute.xlu0 0
  %195 = vperm.xlu0 %194, 0
  %v196 = vpop.permute.xlu0 %195
  %197 = vset.pattern.permute.xlu0 0
  %198 = vperm.xlu0 %197, %v137
  %v199 = vpop.permute.xlu0 %198
  %200 = vset.pattern.permute.xlu0 0
  %201 = vperm.xlu0 %200, %v139
  %v202 = vpop.permute.xlu0 %201
  %203 = vset.pattern.permute.xlu0 0
  %204 = vperm.xlu0 %203, %v141
  %v205 = vpop.permute.xlu0 %204
  %206 = vset.pattern.permute.xlu0 0
  %207 = vperm.xlu0 %206, %v143
  %v208 = vpop.permute.xlu0 %207
  %209 = vset.pattern.permute.xlu0 0
  %210 = vperm.xlu0 %209, %v145
  %v211 = vpop.permute.xlu0 %210
  %212 = vset.pattern.permute.xlu0 0
  %213 = vperm.xlu0 %212, %v147
  %v214 = vpop.permute.xlu0 %213
  %215 = vset.pattern.permute.xlu0 0
  %216 = vperm.xlu0 %215, %v149
  %v217 = vpop.permute.xlu0 %216
  %218 = vset.pattern.permute.xlu0 0
  %219 = vperm.xlu0 %218, 7
  %v220 = vpop.permute.xlu0 %219
  %v221 = vlaneseq
  %v222 = vshrl.u32 %v221, 7
  %v223 = vsub.s32 0, %v222
  %v224 = vrot.slane %v115, %v223
  %vm225 = vcmp.eq.s32.totalorder %v196, %v224
  %vm226 = vcmp.eq.s32.totalorder %v199, %v224
  %vm227 = vcmp.eq.s32.totalorder %v202, %v224
  %vm228 = vcmp.eq.s32.totalorder %v205, %v224
  %vm229 = vcmp.eq.s32.totalorder %v208, %v224
  %vm230 = vcmp.eq.s32.totalorder %v211, %v224
  %vm231 = vcmp.eq.s32.totalorder %v214, %v224
  %vm232 = vcmp.eq.s32.totalorder %v217, %v224
  %vm233 = vcmp.eq.s32.totalorder %v220, %v224
  %v234 = vsel %vm225, %v136, 0.0
  %v235 = vsel %vm226, %v187, 0.0
  %v236 = vsel %vm227, %v188, 0.0
  %v237 = vsel %vm228, %v189, 0.0
  %v238 = vsel %vm229, %v190, 0.0
  %v239 = vsel %vm230, %v191, 0.0
  %v240 = vsel %vm231, %v192, 0.0
  %v241 = vsel %vm232, %v193, 0.0
  %v242 = vsel %vm233, %v184, 0.0
  %v243 = vld [vmem:[%s4] sm:$0xf]
  %vm244 = vcmask 588800
  %v246 = vsel %vm244, %v243, 0
  %248 = vmatprep.subr.mxu0 0.0
  %249 = vmatpush1.msra.mxu0 0.0
  %250 = vmatprep.subr.mxu0 0.0
  %251 = vmatpush1.msra.mxu0 0.0
  %252 = vmatprep.subr.mxu0 0.0
  %253 = vmatpush1.msra.mxu0 0.0
  %254 = vmatprep.subr.mxu0 0.0
  %255 = vmatpush1.msra.mxu0 0.0
  %256 = vmatprep.subr.mxu0 0.0
  %257 = vmatpush1.msra.mxu0 0.0
  %258 = vmatprep.subr.mxu0 0.0
  %259 = vmatpush1.msra.mxu0 0.0
  %260 = vmatprep.subr.mxu0 0.0
  %261 = vmatpush1.msra.mxu0 0.0
  %262 = vmatprep.subr.mxu0 0.0
  %263 = vmatpush1.msra.mxu0 %v242
  %264 = vmatprep.subr.mxu0 0.0
  %265 = vmatpush1.msra.mxu0 %v241
  %266 = vmatprep.subr.mxu0 0.0
  %267 = vmatpush1.msra.mxu0 %v240
  %268 = vmatprep.subr.mxu0 0.0
  %269 = vmatpush1.msra.mxu0 %v239
  %270 = vmatprep.subr.mxu0 0.0
  %271 = vmatpush1.msra.mxu0 %v238
  %272 = vmatprep.subr.mxu0 0.0
  %273 = vmatpush1.msra.mxu0 %v237
  %274 = vmatprep.subr.mxu0 0.0
  %275 = vmatpush1.msra.mxu0 %v236
  %276 = vmatprep.subr.mxu0 0.0
  %277 = vmatpush1.msra.mxu0 %v235
  %278 = vmatprep.subr.mxu0 0.0
  %279 = vmatpush1.msra.mxu0 %v234
  %280 = vmatprep.subr.mxu0 0.0
  %281 = vmatpush2.msra.mxu0 0.0
  %282 = vmatprep.subr.mxu0 0.0
  %283 = vmatpush2.msra.mxu0 0.0
  %284 = vmatprep.subr.mxu0 0.0
  %285 = vmatpush2.msra.mxu0 0.0
  %286 = vmatprep.subr.mxu0 0.0
  %287 = vmatpush2.msra.mxu0 0.0
  %288 = vmatprep.subr.mxu0 0.0
  %289 = vmatpush2.msra.mxu0 0.0
  %290 = vmatprep.subr.mxu0 0.0
  %291 = vmatpush2.msra.mxu0 0.0
  %292 = vmatprep.subr.mxu0 0.0
  %293 = vmatpush2.msra.mxu0 0.0
  %294 = vmatprep.subr.mxu0 0.0
  %295 = vmatpush2.msra.mxu0 0.0
  %296 = vmatprep.subr.mxu0 0.0
  %297 = vmatpush2.msra.mxu0 0.0
  %298 = vmatprep.subr.mxu0 0.0
  %299 = vmatpush2.msra.mxu0 0.0
  %300 = vmatprep.subr.mxu0 0.0
  %301 = vmatpush2.msra.mxu0 0.0
  %302 = vmatprep.subr.mxu0 0.0
  %303 = vmatpush2.msra.mxu0 0.0
  %304 = vmatprep.subr.mxu0 0.0
  %305 = vmatpush2.msra.mxu0 0.0
  %306 = vmatprep.subr.mxu0 0.0
  %307 = vmatpush2.msra.mxu0 0.0
  %308 = vmatprep.subr.mxu0 0.0
  %309 = vmatpush2.msra.mxu0 0.0
  %310 = vmatprep.subr.mxu0 0.0
  %311 = vmatpush2.msra.mxu0 0.0
  %312 = vmatprep.mubr.f32.mxu0 0.0
  %313 = vmatmul.mubr.f32.gmra.mxu0 %v246
  %v314 = vpop.f32.mrf.mxu0
  %v315 = vadd.f32 0.0, %v314
  %v316 = vpop.f32.mrf.mxu0
  %317 = vdwg.mxu0
  %v318 = vxor.u32 %v315, 2147483648
  %v319 = vmul.f32 %v318, 1.442695
  %v320 = vpow.pop %v319
  %v321 = vadd.f32 %v320, 1.0
  %v322 = vrcp.pop %v321
  %v323 = vmul.f32 1.0, %v322
  %v324 = vmax.f32 %v323, 0.01
  %v325 = vmin.f32 %v324, 0.99
  %326 = vst [vmem:[%s5] sm:$0xf] %v325
  // Predicated region
  $region22: #{forward_batched.1} parent=0 // pred_check
    _
  $region23: #{forward_batched.1} parent=0 // pred_check_branch
    %328 = sbr.rel (0) target = $region25
  $region24: #{forward_batched.1} parent=0 // pred_region
    _
  $region25: #{forward_batched.1} parent=0 // pred_fallthru
    _
  // Predicated region
  $region26: #{forward_batched.1} parent=0 // pred_check
    _
  $region27: #{forward_batched.1} parent=0 // pred_check_branch
    %330 = sbr.rel (0) target = $region29
  $region28: #{forward_batched.1} parent=0 // pred_region
    _
  $region29: #{forward_batched.1} parent=0 // pred_fallthru
    _

</llo_original>
